<compile_context>
chip_gen: v6e
topology: v6e:2x2x1
jax: 0.10.0
libtpu: 0.0.40
codegen_flags: <defaults>
</compile_context>

<pallas_src>
import functools

import jax
import jax.numpy as jnp
from jax import lax
from jax.experimental import pallas as pl
from jax.experimental.pallas import tpu as pltpu

USE_L1 = True  # conf.get_bool('use_l1') -> L1 branch chosen statically


def _loss_kernel(out_ref, tgt_ref, w_ref, acc_ref, *, use_l1, m_rows, sub, ragged):
    """One grid step over a (sub, 128) lane-dense slab of flat elements.

    out_ref/tgt_ref/w_ref: (sub, 128) blocks of the flat element streams.
    acc_ref: (sub, 128) f32 output block, resident across the whole grid.
    """
    i = pl.program_id(0)

    @pl.when(i == 0)
    def _():
        acc_ref[...] = jnp.zeros_like(acc_ref)

    o = out_ref[...].astype(jnp.float32)
    t = tgt_ref[...].astype(jnp.float32)
    w = w_ref[...].astype(jnp.float32)

    d = o - t
    elem = jnp.abs(d) if use_l1 else d * d
    val = elem * w  # = elem / (C * (1 + lambda)), per element

    if ragged:
        last = pl.num_programs(0) - 1

        @pl.when(i != last)
        def _():
            acc_ref[...] = acc_ref[...] + val

        @pl.when(i == last)
        def _():
            # Mask sublanes past the true row count (stale VMEM garbage there):
            # select 0 *after* computing val, so NaN/Inf garbage never enters acc.
            row = lax.broadcasted_iota(jnp.int32, (sub, 128), 0) + i * sub
            acc_ref[...] = acc_ref[...] + jnp.where(row < m_rows, val, 0.0)
    else:
        acc_ref[...] = acc_ref[...] + val


def _ceil_div(a, b):
    return -(-a // b)


@functools.partial(jax.jit, static_argnames=("use_l1", "tile_sublanes"))
def rgb_with_background_loss(outputs, targets, lambda_bg, *,
                             use_l1=USE_L1, tile_sublanes=2048):
    """outputs/targets: (..., C); lambda_bg: (...,) matching the leading dims."""
    c = outputs.shape[-1]
    n = lambda_bg.size                      # number of rays
    nc = n * c
    assert outputs.size == nc and targets.shape == outputs.shape

    # --- flat lane-dense streams (row-major reshape: no data movement) -------
    out_flat = outputs.reshape(-1)
    tgt_flat = targets.reshape(-1)
    lam_flat = lambda_bg.reshape(-1).astype(jnp.float32)

    # Per-element weight 1/(C*(1+lambda)), expanded over channels: one contiguous
    # N*C write -- far cheaper than transposing BOTH outputs and targets.
    w_ray = 1.0 / (c * (1.0 + lam_flat))                           # (N,)
    w_flat = jnp.broadcast_to(w_ray[:, None], (n, c)).reshape(-1)  # (N*C,)

    # Pad only if N*C is not a multiple of 128 lanes (and keep >= 8 sublanes).
    # Padded elements contribute exactly 0 (out == tgt == 0, w == 0).
    nc_pad = max(_ceil_div(nc, 128) * 128, 8 * 128)
    if nc_pad != nc:
        pad = nc_pad - nc
        out_flat = jnp.pad(out_flat, (0, pad))
        tgt_flat = jnp.pad(tgt_flat, (0, pad))
        w_flat = jnp.pad(w_flat, (0, pad))
    m = nc_pad // 128                       # rows of the (M, 128) view, >= 8

    out2 = out_flat.reshape(m, 128)
    tgt2 = tgt_flat.reshape(m, 128)
    w2 = w_flat.reshape(m, 128)

    # --- tiling: `sub` sublanes per block; ragged tail masked in-kernel ------
    sub_t = max(8, (int(tile_sublanes) // 8) * 8)
    sub = min(sub_t, (m // 8) * 8)          # multiple of 8, <= m
    n_tiles = _ceil_div(m, sub)
    sub = _ceil_div(m, n_tiles * 8) * 8     # re-balance; still <= m, coverage >= m
    ragged = (n_tiles * sub) != m

    kernel = functools.partial(_loss_kernel, use_l1=use_l1,
                               m_rows=m, sub=sub, ragged=ragged)

    in_bytes = (out2.dtype.itemsize + tgt2.dtype.itemsize + 4) * m * 128
    cost = pl.CostEstimate(flops=4 * m * 128, transcendentals=0,
                           bytes_accessed=in_bytes + sub * 128 * 4)

    partials = pl.pallas_call(
        kernel,
        out_shape=jax.ShapeDtypeStruct((sub, 128), jnp.float32),
        grid_spec=pltpu.PrefetchScalarGridSpec(
            num_scalar_prefetch=0,
            grid=(n_tiles,),
            in_specs=[
                pl.BlockSpec((sub, 128), lambda i: (i, 0)),
                pl.BlockSpec((sub, 128), lambda i: (i, 0)),
                pl.BlockSpec((sub, 128), lambda i: (i, 0)),
            ],
            out_specs=pl.BlockSpec((sub, 128), lambda i: (0, 0)),
        ),
        compiler_params=pltpu.CompilerParams(
            dimension_semantics=("arbitrary",),
            vmem_limit_bytes=32 * 1024 * 1024,  # ~8 MiB actual footprint at sub=2048
        ),
        cost_estimate=cost,
    )(out2, tgt2, w2)

    # sum_elements(elem * w) == sum_rays(mean_c(elem) / (1 + lambda)); /N -> mean.
    weighted_mean = jnp.sum(partials) * (1.0 / n)
    # Tiny N-element reduce; cheaper as plain XLA than as another kernel stream.
    log_term = jnp.mean(jnp.log(lambda_bg.astype(jnp.float32)))
    return weighted_mean + log_term


def reference_loss(outputs, targets, lambda_bg, use_l1=USE_L1):
    diff = outputs - targets
    elem = jnp.abs(diff) if use_l1 else diff * diff
    weighted = jnp.mean(elem, -1) / (1.0 + lambda_bg)
    return jnp.mean(weighted) + jnp.mean(jnp.log(lambda_bg))


if __name__ == "__main__":
    key = jax.random.PRNGKey(0)
    k1, k2, k3 = jax.random.split(key, 3)

    B, R, C = 2, 256, 3  # batch of 2, 256 rays each, RGB
    outputs = jax.random.uniform(k1, (B, R, C), dtype=jnp.float32)
    targets = jax.random.uniform(k2, (B, R, C), dtype=jnp.float32)
    # lambda_bg > 0 (log is taken); one value per ray
    lambda_bg = jax.random.uniform(k3, (B, R), dtype=jnp.float32,
                                   minval=0.1, maxval=1.0)

    loss = rgb_with_background_loss(outputs, targets, lambda_bg)
    loss = jax.block_until_ready(loss)

    ref = reference_loss(outputs, targets, lambda_bg)
    assert jnp.allclose(loss, ref, rtol=1e-5, atol=1e-5), (loss, ref)

    print("KERNEL_OK")
</pallas_src>

<mosaic_0001>
module attributes {stable_mosaic.version = 11 : i64} {
  func.func @_loss_kernel(%arg0: i32, %arg1: memref<8x128xf32, #tpu.memory_space<vmem>>, %arg2: memref<8x128xf32, #tpu.memory_space<vmem>>, %arg3: memref<8x128xf32, #tpu.memory_space<vmem>>, %arg4: memref<8x128xf32, #tpu.memory_space<vmem>>) attributes {dimension_semantics = [#tpu.dimension_semantics<arbitrary>], iteration_bounds = array<i64: 2>, scalar_prefetch = 0 : i64, scratch_operands = 0 : i64, tpu.core_type = #tpu.core_type<tc>, window_params = [{transform_indices = @transform_0, window_bounds = array<i64: 8, 128>}, {transform_indices = @transform_1, window_bounds = array<i64: 8, 128>}, {transform_indices = @transform_2, window_bounds = array<i64: 8, 128>}, {pipeline_mode = #tpu.pipeline_mode<synchronous>, transform_indices = @transform_3, window_bounds = array<i64: 8, 128>}]} {
    %c0_i32 = arith.constant 0 : i32
    %0 = arith.cmpi eq, %arg0, %c0_i32 : i32
    %1 = arith.extui %0 : i1 to i32
    %c0_i32_0 = arith.constant 0 : i32
    %2 = arith.cmpi ne, %1, %c0_i32_0 : i32
    scf.if %2 {
      %cst = arith.constant 0.000000e+00 : f32
      %15 = vector.broadcast %cst : f32 to vector<8x128xf32>
      %c0_9 = arith.constant 0 : index
      %c0_10 = arith.constant 0 : index
      %16 = vector.load %arg4[%c0_9, %c0_10] : memref<8x128xf32, #tpu.memory_space<vmem>>, vector<8x128xf32>
      tpu.vector_store %arg4[%c0_9, %c0_10], %15 {strides = array<i32>} : memref<8x128xf32, #tpu.memory_space<vmem>>, vector<8x128xf32>,
    } else {
    }
    %c0 = arith.constant 0 : index
    %c0_1 = arith.constant 0 : index
    %3 = vector.load %arg1[%c0, %c0_1] : memref<8x128xf32, #tpu.memory_space<vmem>>, vector<8x128xf32>
    %c0_2 = arith.constant 0 : index
    %c0_3 = arith.constant 0 : index
    %4 = vector.load %arg2[%c0_2, %c0_3] : memref<8x128xf32, #tpu.memory_space<vmem>>, vector<8x128xf32>
    %c0_4 = arith.constant 0 : index
    %c0_5 = arith.constant 0 : index
    %5 = vector.load %arg3[%c0_4, %c0_5] : memref<8x128xf32, #tpu.memory_space<vmem>>, vector<8x128xf32>
    %6 = arith.subf %3, %4 : vector<8x128xf32>
    %7 = math.absf %6 : vector<8x128xf32>
    %8 = arith.mulf %7, %5 : vector<8x128xf32>
    %c1_i32 = arith.constant 1 : i32
    %9 = arith.cmpi ne, %arg0, %c1_i32 : i32
    %10 = arith.extui %9 : i1 to i32
    %c0_i32_6 = arith.constant 0 : i32
    %11 = arith.cmpi ne, %10, %c0_i32_6 : i32
    scf.if %11 {
      %c0_9 = arith.constant 0 : index
      %c0_10 = arith.constant 0 : index
      %15 = vector.load %arg4[%c0_9, %c0_10] : memref<8x128xf32, #tpu.memory_space<vmem>>, vector<8x128xf32>
      %16 = arith.addf %15, %8 : vector<8x128xf32>
      %c0_11 = arith.constant 0 : index
      %c0_12 = arith.constant 0 : index
      %17 = vector.load %arg4[%c0_11, %c0_12] : memref<8x128xf32, #tpu.memory_space<vmem>>, vector<8x128xf32>
      tpu.vector_store %arg4[%c0_11, %c0_12], %16 {strides = array<i32>} : memref<8x128xf32, #tpu.memory_space<vmem>>, vector<8x128xf32>,
    } else {
    }
    %c1_i32_7 = arith.constant 1 : i32
    %12 = arith.cmpi eq, %arg0, %c1_i32_7 : i32
    %13 = arith.extui %12 : i1 to i32
    %c0_i32_8 = arith.constant 0 : i32
    %14 = arith.cmpi ne, %13, %c0_i32_8 : i32
    scf.if %14 {
      %15 = tpu.iota {dimensions = array<i32: 0>} : vector<8x128xi32>
      %c8_i32 = arith.constant 8 : i32
      %16 = arith.muli %arg0, %c8_i32 : i32
      %17 = vector.broadcast %16 : i32 to vector<8x128xi32>
      %18 = arith.addi %15, %17 : vector<8x128xi32>
      %c0_9 = arith.constant 0 : index
      %c0_10 = arith.constant 0 : index
      %19 = vector.load %arg4[%c0_9, %c0_10] : memref<8x128xf32, #tpu.memory_space<vmem>>, vector<8x128xf32>
      %c12_i32 = arith.constant 12 : i32
      %20 = vector.broadcast %c12_i32 : i32 to vector<8x128xi32>
      %21 = arith.cmpi slt, %18, %20 : vector<8x128xi32>
      %cst = arith.constant 0.000000e+00 : f32
      %22 = vector.broadcast %cst : f32 to vector<8x128xf32>
      %23 = arith.select %21, %8, %22 : vector<8x128xi1>, vector<8x128xf32>
      %24 = arith.addf %19, %23 : vector<8x128xf32>
      %c0_11 = arith.constant 0 : index
      %c0_12 = arith.constant 0 : index
      %25 = vector.load %arg4[%c0_11, %c0_12] : memref<8x128xf32, #tpu.memory_space<vmem>>, vector<8x128xf32>
      tpu.vector_store %arg4[%c0_11, %c0_12], %24 {strides = array<i32>} : memref<8x128xf32, #tpu.memory_space<vmem>>, vector<8x128xf32>,
    } else {
    }
    return
  }
  func.func @transform_0(%arg0: i32) -> (i32, i32) {
    %c0_i32 = arith.constant 0 : i32
    %c0_i32_0 = arith.constant 0 : i32
    return %arg0, %c0_i32 : i32, i32
  }
  func.func @transform_1(%arg0: i32) -> (i32, i32) {
    %c0_i32 = arith.constant 0 : i32
    %c0_i32_0 = arith.constant 0 : i32
    return %arg0, %c0_i32 : i32, i32
  }
  func.func @transform_2(%arg0: i32) -> (i32, i32) {
    %c0_i32 = arith.constant 0 : i32
    %c0_i32_0 = arith.constant 0 : i32
    return %arg0, %c0_i32 : i32, i32
  }
  func.func @transform_3(%arg0: i32) -> (i32, i32) {
    %c0_i32 = arith.constant 0 : i32
    %c0_i32_0 = arith.constant 0 : i32
    %c0_i32_1 = arith.constant 0 : i32
    return %c0_i32, %c0_i32_0 : i32, i32
  }
}

</mosaic_0001>

<llo_original>
// kernel: rgb_with_background_loss.1
$region0: #{rgb_with_background_loss.1}
  #allocation0 [shape = 'u32[]', space=smem, size = 0x4, offset = 0x4, fixed_abs, tag = 'smem constant byte address 0x4 - core index']
  #allocation1 [shape = 'u32[144,128]{1,0:T(1,128)}', space=vmem, size = 0x12000, scoped, tag = 'internal scratch']
  %s0 = inlined_call_operand.vmem [shape: f32[12,128], index: 0, kind: input, shape index: {}]
  %s1 = inlined_call_operand.vmem [shape: f32[12,128], index: 1, kind: input, shape index: {}]
  %s2 = inlined_call_operand.vmem [shape: f32[12,128], index: 2, kind: input, shape index: {}]
  %s3 = inlined_call_operand.vmem [shape: f32[8,128], index: 3, kind: output, shape index: {}]
  %s4 = sld [smem:[#allocation0]]
  $region57: #{rgb_with_background_loss.1} parent=0
    _
  %s6 = ssub.s32 1, %s4
  %s7 = scalar_select 0, %s6, %s4
  loop: start=0, step=1, limit=4
  $region2: #{rgb_with_background_loss.1} parent=0 // loop_pre_header
    _
  $region3: #{rgb_with_background_loss.1} parent=0 // loop_header
    %s9 = sphi 0, %s13
    %p10 = scmp.ge.s32.totalorder %s9, 4
    %s19 = sphi 0, %s21
    %s22 = sphi 0, %s19
    %s23 = sphi 0, %s22
    %s39 = sphi 0, %s23
    %s45 = sphi 0, %s47
    %s48 = sphi 0, %s45
    %s49 = sphi 0, %s48
    %s65 = sphi 0, %s49
    %s71 = sphi 0, %s73
    %s74 = sphi 0, %s71
    %s75 = sphi 0, %s74
    %s91 = sphi 0, %s75
    %s95 = sphi 0, %s95
    %s97 = sphi 0, %s95
    %s98 = sphi 0, %s97
    %s112 = sphi 0, %s98
  $region4: #{rgb_with_background_loss.1} parent=0 // loop_header_branch
    %12 = sbr.rel (%p10) target = $region8
  $region5: #{rgb_with_background_loss.1} parent=0 // loop_body
    %s14 = ssub.s32 %s9, 1
    %s15 = ssub.s32 %s9, 2
    %s16 = sadd.s32 %s9, 1
    %s17 = ssub.s32 %s9, %s16
    %p18 = scmp.eq.s32.totalorder %s17, 0
    %s20 = sadd.s32 %s19, 1
    %s21 = scalar_select %p18, %s19, %s20
    %p24 = pneg %p18
    %p25 = scmp.eq.s32.totalorder %s9, 1
    %p26 = por %p24, %p25
    %p27 = scmp.ne.s32.totalorder %s19, %s22
    %p28 = scmp.eq.s32.totalorder %s9, 0
    %p29 = por %p27, %p28
    %p30 = scmp.ne.s32.totalorder %s19, %s22
    %p31 = scmp.eq.s32.totalorder %s14, 1
    %p32 = por %p30, %p31
    %p33 = scmp.ne.s32.totalorder %s22, %s23
    %p34 = scmp.eq.s32.totalorder %s14, 0
    %p35 = por %p33, %p34
    %p36 = scmp.ne.s32.totalorder %s22, %s23
    %p37 = scmp.eq.s32.totalorder %s15, 1
    %p38 = por %p36, %p37
    %p40 = scmp.ne.s32.totalorder %s23, %s39
    %p41 = scmp.eq.s32.totalorder %s15, 0
    %p42 = por %p40, %p41
    %s43 = ssub.s32 %s9, %s16
    %p44 = scmp.eq.s32.totalorder %s43, 0
    %s46 = sadd.s32 %s45, 1
    %s47 = scalar_select %p44, %s45, %s46
    %p50 = pneg %p44
    %p51 = scmp.eq.s32.totalorder %s9, 1
    %p52 = por %p50, %p51
    %p53 = scmp.ne.s32.totalorder %s45, %s48
    %p54 = scmp.eq.s32.totalorder %s9, 0
    %p55 = por %p53, %p54
    %p56 = scmp.ne.s32.totalorder %s45, %s48
    %p57 = scmp.eq.s32.totalorder %s14, 1
    %p58 = por %p56, %p57
    %p59 = scmp.ne.s32.totalorder %s48, %s49
    %p60 = scmp.eq.s32.totalorder %s14, 0
    %p61 = por %p59, %p60
    %p62 = scmp.ne.s32.totalorder %s48, %s49
    %p63 = scmp.eq.s32.totalorder %s15, 1
    %p64 = por %p62, %p63
    %p66 = scmp.ne.s32.totalorder %s49, %s65
    %p67 = scmp.eq.s32.totalorder %s15, 0
    %p68 = por %p66, %p67
    %s69 = ssub.s32 %s9, %s16
    %p70 = scmp.eq.s32.totalorder %s69, 0
    %s72 = sadd.s32 %s71, 1
    %s73 = scalar_select %p70, %s71, %s72
    %p76 = pneg %p70
    %p77 = scmp.eq.s32.totalorder %s9, 1
    %p78 = por %p76, %p77
    %p79 = scmp.ne.s32.totalorder %s71, %s74
    %p80 = scmp.eq.s32.totalorder %s9, 0
    %p81 = por %p79, %p80
    %p82 = scmp.ne.s32.totalorder %s71, %s74
    %p83 = scmp.eq.s32.totalorder %s14, 1
    %p84 = por %p82, %p83
    %p85 = scmp.ne.s32.totalorder %s74, %s75
    %p86 = scmp.eq.s32.totalorder %s14, 0
    %p87 = por %p85, %p86
    %p88 = scmp.ne.s32.totalorder %s74, %s75
    %p89 = scmp.eq.s32.totalorder %s15, 1
    %p90 = por %p88, %p89
    %p92 = scmp.ne.s32.totalorder %s75, %s91
    %p93 = scmp.eq.s32.totalorder %s15, 0
    %p94 = por %p92, %p93
    %s96 = sadd.s32 %s95, 1
    %p99 = scmp.eq.s32.totalorder %s9, 1
    %p100 = scmp.ne.s32.totalorder %s95, %s97
    %p101 = scmp.eq.s32.totalorder %s9, 0
    %p102 = por %p100, %p101
    %p103 = scmp.ne.s32.totalorder %s95, %s97
    %p104 = scmp.eq.s32.totalorder %s14, 1
    %p105 = por %p103, %p104
    %p106 = scmp.ne.s32.totalorder %s97, %s98
    %p107 = scmp.eq.s32.totalorder %s14, 0
    %p108 = por %p106, %p107
    %p109 = scmp.ne.s32.totalorder %s97, %s98
    %p110 = scmp.eq.s32.totalorder %s15, 1
    %p111 = por %p109, %p110
    %p113 = scmp.ne.s32.totalorder %s98, %s112
    %p114 = scmp.eq.s32.totalorder %s15, 0
    %p115 = por %p113, %p114
    %p116 = scmp.le.s32.totalorder 1, %s9
    %p117 = scmp.lt.s32.totalorder %s9, 3
    %p118 = pnand %p116, %p117
    %p119 = pneg %p118
    // Predicated region
    $region9: #{rgb_with_background_loss.1} parent=5 // pred_check
      _
    $region10: #{rgb_with_background_loss.1} parent=5 // pred_check_branch
      %121 = sbr.rel (%p118) target = $region12
    $region11: #{rgb_with_background_loss.1} parent=5 // pred_region
      %s122 = ssub.s32 %s9, 1
    $region12: #{rgb_with_background_loss.1} parent=5 // pred_fallthru
      _
    %p123 = scmp.lt.s32.totalorder %s9, 2
    // Predicated region
    $region13: #{rgb_with_background_loss.1} parent=5 // pred_check
      %p124 = pneg %p123
    $region14: #{rgb_with_background_loss.1} parent=5 // pred_check_branch
      %126 = sbr.rel (%p124) target = $region16
    $region15: #{rgb_with_background_loss.1} parent=5 // pred_region
      // Predicated region
      $region17: #{rgb_with_background_loss.1} parent=15 // pred_check
        %p127 = pneg %p29
      $region18: #{rgb_with_background_loss.1} parent=15 // pred_check_branch
        %129 = sbr.rel (%p127) target = $region20
      $region19: #{rgb_with_background_loss.1} parent=15 // pred_region
        %p130 = scmp.lt.s32.totalorder %s9, 1
        %s131 = scalar_select %p130, %s9, 1
        %s132 = smul.addr %s131, 8
        %s133 = scalar_lea.vmem %s0, %s132
      $region20: #{rgb_with_background_loss.1} parent=15 // pred_fallthru
        _
      // Predicated region
      $region21: #{rgb_with_background_loss.1} parent=15 // pred_check
        %p134 = pneg %p55
      $region22: #{rgb_with_background_loss.1} parent=15 // pred_check_branch
        %136 = sbr.rel (%p134) target = $region24
      $region23: #{rgb_with_background_loss.1} parent=15 // pred_region
        %p137 = scmp.lt.s32.totalorder %s9, 1
        %s138 = scalar_select %p137, %s9, 1
        %s139 = smul.addr %s138, 8
        %s140 = scalar_lea.vmem %s1, %s139
      $region24: #{rgb_with_background_loss.1} parent=15 // pred_fallthru
        _
      // Predicated region
      $region25: #{rgb_with_background_loss.1} parent=15 // pred_check
        %p141 = pneg %p81
      $region26: #{rgb_with_background_loss.1} parent=15 // pred_check_branch
        %143 = sbr.rel (%p141) target = $region28
      $region27: #{rgb_with_background_loss.1} parent=15 // pred_region
        %p144 = scmp.lt.s32.totalorder %s9, 1
        %s145 = scalar_select %p144, %s9, 1
        %s146 = smul.addr %s145, 8
        %s147 = scalar_lea.vmem %s2, %s146
      $region28: #{rgb_with_background_loss.1} parent=15 // pred_fallthru
        _
    $region16: #{rgb_with_background_loss.1} parent=5 // pred_fallthru
      _
    %p148 = scmp.le.s32.totalorder 1, %s9
    %p149 = scmp.lt.s32.totalorder %s9, 3
    %p150 = pnand %p148, %p149
    %p151 = pneg %p150
    // Predicated region
    $region29: #{rgb_with_background_loss.1} parent=5 // pred_check
      _
    $region30: #{rgb_with_background_loss.1} parent=5 // pred_check_branch
      %153 = sbr.rel (%p150) target = $region32
    $region31: #{rgb_with_background_loss.1} parent=5 // pred_region
      %s154 = ssub.s32 %s9, 1
      %p155 = scmp.lt.s32.totalorder %s14, 1
      %s156 = scalar_select %p155, %s14, 1
      %s157 = smul.addr %s156, 8
      %s158 = scalar_lea.vmem %s0, %s157
      %p159 = pneg %p35
      %p160 = pneg %p32
      %p161 = scmp.lt.s32.totalorder %s14, 1
      %s162 = scalar_select %p161, %s14, 1
      %s163 = smul.addr %s162, 8
      %s164 = scalar_lea.vmem %s1, %s163
      %p165 = pneg %p61
      %p166 = pneg %p58
      %p167 = scmp.lt.s32.totalorder %s14, 1
      %s168 = scalar_select %p167, %s14, 1
      %s169 = smul.addr %s168, 8
      %s170 = scalar_lea.vmem %s2, %s169
      %p171 = pneg %p87
      %p172 = pneg %p84
      %p173 = pneg %p108
      %p174 = pneg %p105
      %p175 = scmp.lt.s32.totalorder %s14, 1
      %s176 = scalar_select %p175, %s14, 1
      %s177 = smul.addr %s176, 8
      %s178 = scalar_lea.vmem %s0, %s177
      %p179 = scmp.lt.s32.totalorder %s14, 1
      %s180 = scalar_select %p179, %s14, 1
      %s181 = smul.addr %s180, 8
      %s182 = scalar_lea.vmem %s1, %s181
      %p183 = scmp.lt.s32.totalorder %s14, 1
      %s184 = scalar_select %p183, %s14, 1
      %s185 = smul.addr %s184, 8
      %s186 = scalar_lea.vmem %s2, %s185
      %p187 = scmp.eq.s32.totalorder %s14, 0
      // Predicated region
      $region33: #{rgb_with_background_loss.1} parent=31 // pred_check
        %p188 = pneg %p187
      $region34: #{rgb_with_background_loss.1} parent=31 // pred_check_branch
        %190 = sbr.rel (%p188) target = $region36
      $region35: #{rgb_with_background_loss.1} parent=31 // pred_region
        %191 = vst [vmem:[%s3] sm:$0xff] 0.0
      $region36: #{rgb_with_background_loss.1} parent=31 // pred_fallthru
        _
      %v192 = vld [vmem:[%s178] sm:$0xff]
      %v193 = vld [vmem:[%s182] sm:$0xff]
      %v194 = vld [vmem:[%s186] sm:$0xff]
      %v195 = vsub.f32 %v192, %v193
      %v196 = vand.u32 2147483647, %v195
      %v197 = vmul.f32 %v196, %v194
      %p198 = scmp.ne.s32.totalorder %s14, 1
      // Predicated region
      $region37: #{rgb_with_background_loss.1} parent=31 // pred_check
        %p199 = pneg %p198
      $region38: #{rgb_with_background_loss.1} parent=31 // pred_check_branch
        %201 = sbr.rel (%p199) target = $region40
      $region39: #{rgb_with_background_loss.1} parent=31 // pred_region
        %v202 = vld [vmem:[%s3] sm:$0xff]
        %v203 = vadd.f32 %v202, %v197
        %204 = vst [vmem:[%s3] sm:$0xff] %v203
      $region40: #{rgb_with_background_loss.1} parent=31 // pred_fallthru
        _
      %p205 = scmp.eq.s32.totalorder %s14, 1
      // Predicated region
      $region41: #{rgb_with_background_loss.1} parent=31 // pred_check
        %p206 = pneg %p205
      $region42: #{rgb_with_background_loss.1} parent=31 // pred_check_branch
        %208 = sbr.rel (%p206) target = $region44
      $region43: #{rgb_with_background_loss.1} parent=31 // pred_region
        %v209 = vlaneseq
        %v210 = vshrl.u32 %v209, 7
        %s211 = smul.u32 %s14, 8
        %v212 = vstv %s211
        %v213 = vadd.s32 %v210, %v212
        %v214 = vld [vmem:[%s3] sm:$0xff]
        %vm215 = vcmp.lt.s32.totalorder %v213, 12
        %v216 = vsel %vm215, %v197, 0.0
        %v217 = vadd.f32 %v214, %v216
        %218 = vst [vmem:[%s3] sm:$0xff] %v217
      $region44: #{rgb_with_background_loss.1} parent=31 // pred_fallthru
        _
      // Predicated region
      $region45: #{rgb_with_background_loss.1} parent=31 // pred_check
        %p219 = pneg %p105
      $region46: #{rgb_with_background_loss.1} parent=31 // pred_check_branch
        %221 = sbr.rel (%p219) target = $region48
      $region47: #{rgb_with_background_loss.1} parent=31 // pred_region
        _
      $region48: #{rgb_with_background_loss.1} parent=31 // pred_fallthru
        _
      // Predicated region
      $region49: #{rgb_with_background_loss.1} parent=31 // pred_check
        %p222 = pneg %p105
      $region50: #{rgb_with_background_loss.1} parent=31 // pred_check_branch
        %224 = sbr.rel (%p222) target = $region52
      $region51: #{rgb_with_background_loss.1} parent=31 // pred_region
        _
      $region52: #{rgb_with_background_loss.1} parent=31 // pred_fallthru
        _
    $region32: #{rgb_with_background_loss.1} parent=5 // pred_fallthru
      _
    %p225 = scmp.le.s32.totalorder 2, %s9
    // Predicated region
    $region53: #{rgb_with_background_loss.1} parent=5 // pred_check
      %p226 = pneg %p225
    $region54: #{rgb_with_background_loss.1} parent=5 // pred_check_branch
      %228 = sbr.rel (%p226) target = $region56
    $region55: #{rgb_with_background_loss.1} parent=5 // pred_region
      %s229 = ssub.s32 %s9, 2
    $region56: #{rgb_with_background_loss.1} parent=5 // pred_fallthru
      _
  $region6: #{rgb_with_background_loss.1} parent=0 // loop_footer
    %s13 = sadd.s32 1, %s9
  $region7: #{rgb_with_background_loss.1} parent=0 // loop_footer_branch
    %8 = sbr.rel target = $region3
  $region8: #{rgb_with_background_loss.1} parent=0 // loop_exit
    _

</llo_original>
